<compile_context>
chip_gen: v5e
topology: v5e:2x2
jax: 0.10.0
libtpu: 0.0.40
codegen_flags: <defaults>
</compile_context>

<pallas_src>
import functools

import jax
import jax.numpy as jnp
from jax.experimental import pallas as pl
from jax.experimental.pallas import tpu as pltpu

EPS = 1e-12      # torch F.normalize clamp
LANE = 128       # TPU lane width


def _econv_kernel(a_ref, x_ref, w_ref, b_ref, o_ref, *, normalize, mxu_dtype):
    # a_ref: (Bt, N, N)  x_ref: (Bt, N, Fin)  w_ref: (Fin, Fp)  b_ref: (1, Fp)
    # o_ref: (Bt, N, Fp)
    bt, n, fin = x_ref.shape
    fp = w_ref.shape[1]

    # ---- Linear: ax = x @ W + b as one (Bt*N, Fin) @ (Fin, Fp) MXU call ----
    w = w_ref[...].astype(mxu_dtype)
    sub = 8 if jnp.dtype(x_ref.dtype).itemsize == 4 else 16   # sublane packing
    if bt == 1 or n % sub == 0:
        x2 = x_ref[...].reshape(bt * n, fin).astype(mxu_dtype)
        ax = jnp.dot(x2, w, preferred_element_type=jnp.float32)
        ax = (ax + b_ref[...]).reshape(bt, n, fp)
    else:
        # Fallback when the leading-dim merge is not sublane-tile aligned.
        ax = jnp.einsum("bnf,fk->bnk", x_ref[...].astype(mxu_dtype), w,
                        preferred_element_type=jnp.float32) + b_ref[...]

    # ---- L1 column normalization of A  (== F.normalize(A, p=1, dim=-2)) ----
    A = a_ref[...]
    if normalize:
        Af = A.astype(jnp.float32)                              # norms in f32
        col = jnp.sum(jnp.abs(Af), axis=1, keepdims=True)       # (Bt, 1, N)
        inv = pl.reciprocal(jnp.maximum(col, EPS), approx=False)
        if n > fp:
            # Cheaper: scale the rows of ax (N*Fp mults) instead of the columns
            # of A (N*N mults).  (A * inv_col) @ ax == A @ (ax * inv_row).
            ax = ax * inv.reshape(bt, n, 1)
            Ab = A.astype(mxu_dtype)
        else:
            Ab = (Af * inv).astype(mxu_dtype)                   # cast AFTER scaling
    else:
        Ab = A.astype(mxu_dtype)

    # ---- out = relu(A @ ax), f32 accumulation ----
    out = jnp.einsum("bij,bjf->bif", Ab, ax.astype(mxu_dtype),
                     preferred_element_type=jnp.float32)
    o_ref[...] = jnp.maximum(out, 0.0).astype(o_ref.dtype)


def _vmem_budget_bytes():
    """~75% of the physical per-core VMEM (leave headroom for compiler scratch)."""
    try:
        cap = int(pltpu.get_tpu_info().vmem_capacity_bytes)
    except Exception:
        cap = 64 << 20          # conservative fallback (v7x per-core VMEM)
    return (cap * 3) // 4


def _pick_batch_tile(B, N, Fin, Fp, a_bytes, x_bytes, budget_bytes, min_steps=4):
    """Largest Bt fitting the VMEM budget while keeping >= min_steps grid steps
    (>=2 per TensorCore on v7x) when B allows, preferring exact divisors of B."""
    per_graph = (2 * a_bytes * N * N          # A block, double-buffered
                 + 2 * x_bytes * N * Fin      # x block, double-buffered
                 + 2 * 4 * N * Fp             # out block (f32), double-buffered
                 + 6 * N * N                  # f32 + bf16 in-kernel A temporaries
                 + 8 * N * Fp                 # f32 ax + bf16 ax temporaries
                 + 6 * N * Fin)               # flattened / cast x temporaries
    cap = max(1, budget_bytes // max(per_graph, 1))
    bt = max(1, min(B, cap))
    target_steps = min(min_steps, B)
    bt = min(bt, max(1, B // target_steps))
    # Prefer an exact divisor of B when one is within 2x of the cap (avoids a
    # masked partial trailing block); otherwise accept a cdiv grid.
    for d in range(bt, 0, -1):
        if B % d == 0:
            return d if 2 * d >= bt else bt
    return bt


def econv(A, x, W_t, b, norm=True, *, mxu_dtype=jnp.bfloat16):
    """A: (B,N,N), x: (B,N,Fin), W_t: (Fin,Fout), b: (Fout,). Returns (B,N,Fout) f32."""
    B, N, _ = A.shape
    Fin = x.shape[-1]
    Fout = W_t.shape[-1]

    # Lane-dense output only when the write amplification stays < 2x.
    Fp_pad = ((Fout + LANE - 1) // LANE) * LANE
    pad = (Fp_pad != Fout) and (Fp_pad < 2 * Fout)
    Fp = Fp_pad if pad else Fout
    W_p = jnp.pad(W_t, ((0, 0), (0, Fp - Fout))) if pad else W_t
    b_p = jnp.pad(b, (0, Fp - Fout)) if pad else b
    b2 = b_p.reshape(1, Fp).astype(jnp.float32)

    budget = _vmem_budget_bytes()
    a_bytes = jnp.dtype(A.dtype).itemsize
    x_bytes = jnp.dtype(x.dtype).itemsize
    Bt = _pick_batch_tile(B, N, Fin, Fp, a_bytes, x_bytes, budget)
    grid = (pl.cdiv(B, Bt),)

    kern = functools.partial(_econv_kernel, normalize=bool(norm),
                             mxu_dtype=mxu_dtype)

    out = pl.pallas_call(
        kern,
        out_shape=jax.ShapeDtypeStruct((B, N, Fp), jnp.float32),
        grid_spec=pltpu.PrefetchScalarGridSpec(
            num_scalar_prefetch=0,
            grid=grid,
            in_specs=[
                pl.BlockSpec((Bt, N, N),   lambda i: (i, 0, 0)),
                pl.BlockSpec((Bt, N, Fin), lambda i: (i, 0, 0)),
                pl.BlockSpec((Fin, Fp),    lambda i: (0, 0)),
                pl.BlockSpec((1, Fp),      lambda i: (0, 0)),
            ],
            out_specs=pl.BlockSpec((Bt, N, Fp), lambda i: (i, 0, 0)),
        ),
        compiler_params=pltpu.CompilerParams(
            dimension_semantics=("parallel",),
            vmem_limit_bytes=int(budget),
        ),
    )(A, x, W_p, b2)

    return out[..., :Fout] if pad else out


def econv_ref(A, x, W_t, b, norm=True):
    if norm:
        A = A / jnp.maximum(jnp.sum(jnp.abs(A), axis=-2, keepdims=True), EPS)
    ax = x @ W_t + b
    return jnp.maximum(jnp.einsum("bij,bjf->bif", A, ax), 0.0)


def _make_inputs(key, B, N, Fin, Fout):
    kA, kx, kw, kb = jax.random.split(key, 4)
    A = jax.random.uniform(kA, (B, N, N), dtype=jnp.float32)
    x = jax.random.normal(kx, (B, N, Fin), dtype=jnp.float32)
    bound = 1.0 / (Fin ** 0.5)                          # nn.Linear default init
    W = jax.random.uniform(kw, (Fout, Fin), minval=-bound, maxval=bound,
                           dtype=jnp.float32)
    b = jax.random.uniform(kb, (Fout,), minval=-bound, maxval=bound,
                           dtype=jnp.float32)
    return A, x, W.T, b                                 # (Fin, Fout) for x @ W_t


if __name__ == "__main__":
    root = jax.random.PRNGKey(0)
    k1, k2, k3 = jax.random.split(root, 3)

    # Config 1: B=4, N=16, Fin=32, Fout=32 (no lane padding, A-column scaling).
    A, x, Wt, b = _make_inputs(k1, 4, 16, 32, 32)
    for norm in (True, False):
        out = jax.block_until_ready(econv(A, x, Wt, b, norm=norm))
        ref = econv_ref(A, x, Wt, b, norm=norm)
        assert out.shape == ref.shape
        assert jnp.allclose(out, ref, atol=5e-2, rtol=5e-2), f"cfg1 norm={norm}"
    # Exact-path check (f32 MXU operands) to validate the kernel structure.
    out32 = jax.block_until_ready(econv(A, x, Wt, b, norm=True,
                                        mxu_dtype=jnp.float32))
    assert jnp.allclose(out32, econv_ref(A, x, Wt, b, norm=True),
                        atol=1e-5, rtol=1e-5), "cfg1 f32 exact path"

    # Config 2: N > Fout (ax-row-scaling normalization path, narrow unpadded out).
    A2, x2, Wt2, b2v = _make_inputs(k2, 2, 64, 16, 8)
    out2 = jax.block_until_ready(econv(A2, x2, Wt2, b2v, norm=True))
    ref2 = econv_ref(A2, x2, Wt2, b2v, norm=True)
    assert out2.shape == ref2.shape
    assert jnp.allclose(out2, ref2, atol=5e-2, rtol=5e-2), "cfg2 norm=True"

    # Config 3: Fout=96 -> padded to 128 (pad factor < 2), wrapper slice.
    A3, x3, Wt3, b3 = _make_inputs(k3, 2, 16, 32, 96)
    out3 = jax.block_until_ready(econv(A3, x3, Wt3, b3, norm=True))
    ref3 = econv_ref(A3, x3, Wt3, b3, norm=True)
    assert out3.shape == ref3.shape
    assert jnp.allclose(out3, ref3, atol=5e-2, rtol=5e-2), "cfg3 padded output"

    print("KERNEL_OK")
</pallas_src>

<mosaic_0001>
module attributes {stable_mosaic.version = 11 : i64} {
  func.func @_econv_kernel(%arg0: i32, %arg1: memref<1x16x16xf32, #tpu.memory_space<vmem>>, %arg2: memref<1x16x32xf32, #tpu.memory_space<vmem>>, %arg3: memref<32x32xf32, #tpu.memory_space<vmem>>, %arg4: memref<1x32xf32, #tpu.memory_space<vmem>>, %arg5: memref<1x16x32xf32, #tpu.memory_space<vmem>>) attributes {dimension_semantics = [#tpu.dimension_semantics<parallel>], iteration_bounds = array<i64: 4>, scalar_prefetch = 0 : i64, scratch_operands = 0 : i64, tpu.core_type = #tpu.core_type<tc>, window_params = [{transform_indices = @transform_0, window_bounds = array<i64: 1, 16, 16>}, {transform_indices = @transform_1, window_bounds = array<i64: 1, 16, 32>}, {pipeline_mode = #tpu.pipeline_mode<synchronous>, transform_indices = @transform_2, window_bounds = array<i64: 32, 32>}, {pipeline_mode = #tpu.pipeline_mode<synchronous>, transform_indices = @transform_3, window_bounds = array<i64: 1, 32>}, {transform_indices = @transform_4, window_bounds = array<i64: 1, 16, 32>}]} {
    %c0 = arith.constant 0 : index
    %c0_0 = arith.constant 0 : index
    %0 = vector.load %arg3[%c0, %c0_0] : memref<32x32xf32, #tpu.memory_space<vmem>>, vector<32x32xf32>
    %1 = arith.truncf %0 : vector<32x32xf32> to vector<32x32xbf16>
    %c0_1 = arith.constant 0 : index
    %c0_2 = arith.constant 0 : index
    %c0_3 = arith.constant 0 : index
    %2 = vector.load %arg2[%c0_1, %c0_2, %c0_3] : memref<1x16x32xf32, #tpu.memory_space<vmem>>, vector<1x16x32xf32>
    %3 = vector.shape_cast %2 : vector<1x16x32xf32> to vector<16x32xf32>
    %4 = arith.truncf %3 : vector<16x32xf32> to vector<16x32xbf16>
    %cst = arith.constant dense<0.000000e+00> : vector<16x32xf32>
    %5 = tpu.matmul %4, %1, %cst {dimension_numbers = #tpu.dot_dimension_numbers<[1], [0], [0], [1], [0, 0, 1, 1], [], []>} : vector<16x32xbf16>, vector<32x32xbf16>, vector<16x32xf32> -> vector<16x32xf32>
    %c0_4 = arith.constant 0 : index
    %c0_5 = arith.constant 0 : index
    %6 = vector.load %arg4[%c0_4, %c0_5] : memref<1x32xf32, #tpu.memory_space<vmem>>, vector<1x32xf32>
    %7 = vector.broadcast %6 : vector<1x32xf32> to vector<16x32xf32>
    %8 = arith.addf %5, %7 : vector<16x32xf32>
    %9 = vector.shape_cast %8 : vector<16x32xf32> to vector<1x16x32xf32>
    %c0_6 = arith.constant 0 : index
    %c0_7 = arith.constant 0 : index
    %c0_8 = arith.constant 0 : index
    %10 = vector.load %arg1[%c0_6, %c0_7, %c0_8] : memref<1x16x16xf32, #tpu.memory_space<vmem>>, vector<1x16x16xf32>
    %11 = math.absf %10 : vector<1x16x16xf32>
    %cst_9 = arith.constant dense<0.000000e+00> : vector<1x16xf32>
    %12 = vector.multi_reduction <add>, %11, %cst_9 [1] : vector<1x16x16xf32> to vector<1x16xf32>
    %13 = vector.shape_cast %12 : vector<1x16xf32> to vector<1x1x16xf32>
    %cst_10 = arith.constant 9.99999996E-13 : f32
    %14 = vector.broadcast %cst_10 : f32 to vector<1x1x16xf32>
    %15 = arith.maximumf %13, %14 : vector<1x1x16xf32>
    %16 = tpu.reciprocal %15 : vector<1x1x16xf32> -> vector<1x1x16xf32>
    %17 = vector.broadcast %16 : vector<1x1x16xf32> to vector<1x16x16xf32>
    %18 = arith.mulf %10, %17 : vector<1x16x16xf32>
    %19 = arith.truncf %18 : vector<1x16x16xf32> to vector<1x16x16xbf16>
    %20 = arith.truncf %9 : vector<1x16x32xf32> to vector<1x16x32xbf16>
    "tpu.trace_start"() <{level = 10 : i32, message = "bij,bjf->bif"}> : () -> ()
    %cst_11 = arith.constant dense<0.000000e+00> : vector<1x16x32xf32>
    %21 = tpu.matmul %19, %20, %cst_11 {dimension_numbers = #tpu.dot_dimension_numbers<[2], [1], [1], [2], [0, 0, 0, 1, 1, 2], [0], [0]>} : vector<1x16x16xbf16>, vector<1x16x32xbf16>, vector<1x16x32xf32> -> vector<1x16x32xf32>
    "tpu.trace_stop"() : () -> ()
    %cst_12 = arith.constant 0.000000e+00 : f32
    %22 = vector.broadcast %cst_12 : f32 to vector<1x16x32xf32>
    %23 = arith.maximumf %21, %22 : vector<1x16x32xf32>
    %c0_13 = arith.constant 0 : index
    %c0_14 = arith.constant 0 : index
    %c0_15 = arith.constant 0 : index
    %24 = vector.load %arg5[%c0_13, %c0_14, %c0_15] : memref<1x16x32xf32, #tpu.memory_space<vmem>>, vector<1x16x32xf32>
    tpu.vector_store %arg5[%c0_13, %c0_14, %c0_15], %23 {strides = array<i32>} : memref<1x16x32xf32, #tpu.memory_space<vmem>>, vector<1x16x32xf32>,
    return
  }
  func.func @transform_0(%arg0: i32) -> (i32, i32, i32) {
    %c0_i32 = arith.constant 0 : i32
    %c0_i32_0 = arith.constant 0 : i32
    %c0_i32_1 = arith.constant 0 : i32
    return %arg0, %c0_i32, %c0_i32_0 : i32, i32, i32
  }
  func.func @transform_1(%arg0: i32) -> (i32, i32, i32) {
    %c0_i32 = arith.constant 0 : i32
    %c0_i32_0 = arith.constant 0 : i32
    %c0_i32_1 = arith.constant 0 : i32
    return %arg0, %c0_i32, %c0_i32_0 : i32, i32, i32
  }
  func.func @transform_2(%arg0: i32) -> (i32, i32) {
    %c0_i32 = arith.constant 0 : i32
    %c0_i32_0 = arith.constant 0 : i32
    %c0_i32_1 = arith.constant 0 : i32
    return %c0_i32, %c0_i32_0 : i32, i32
  }
  func.func @transform_3(%arg0: i32) -> (i32, i32) {
    %c0_i32 = arith.constant 0 : i32
    %c0_i32_0 = arith.constant 0 : i32
    %c0_i32_1 = arith.constant 0 : i32
    return %c0_i32, %c0_i32_0 : i32, i32
  }
  func.func @transform_4(%arg0: i32) -> (i32, i32, i32) {
    %c0_i32 = arith.constant 0 : i32
    %c0_i32_0 = arith.constant 0 : i32
    %c0_i32_1 = arith.constant 0 : i32
    return %arg0, %c0_i32, %c0_i32_0 : i32, i32, i32
  }
}

</mosaic_0001>

<llo_original>
// kernel: tpu_custom_call.1
$region0: #{tpu_custom_call.1}
  #allocation0 [shape = 'u32[]', space=smem, size = 0x4, offset = 0x4, fixed_abs, tag = 'smem constant byte address 0x4 - core index']
  #allocation1 [shape = 'u32[72,128]{1,0:T(1,128)}', space=vmem, size = 0x9000, scoped, tag = 'internal scratch']
  %s0 = inlined_call_operand.hbm [shape: f32[4,16,16], index: 0, kind: input, shape index: {}]
  %s1 = inlined_call_operand.hbm [shape: f32[4,16,32], index: 1, kind: input, shape index: {}]
  %s2 = inlined_call_operand.hbm [shape: f32[32,32], index: 2, kind: input, shape index: {}]
  %s3 = inlined_call_operand.vmem [shape: f32[1,32], index: 3, kind: input, shape index: {}]
  %s4 = inlined_call_operand.hbm [shape: f32[4,16,32], index: 4, kind: output, shape index: {}]
  %s5 = sld [smem:[#allocation0]]
  $region61: #{tpu_custom_call.1} parent=0
    _
  %s7 = ssub.s32 1, %s5
  %s8 = scalar_select 0, %s7, %s5
  $region1: #{tpu_custom_call.1} parent=0
    #allocation2 [shape = 'u8[16384]{0}', space=vmem, size = 0x4000, scoped, tag = 'input window, operand 0']
    #allocation3 [shape = 's32[2]{0}', space=sflag, size = 0x8, scoped, tag = 'scoped memory for tpu_custom_call.1']
    #allocation4 [shape = 's32[2]{0}', space=sflag, size = 0x8, scoped, tag = 'scoped memory for tpu_custom_call.1']
    #allocation5 [shape = 'u8[16384]{0}', space=vmem, size = 0x4000, scoped, tag = 'input window, operand 1']
    #allocation6 [shape = 's32[2]{0}', space=sflag, size = 0x8, scoped, tag = 'scoped memory for tpu_custom_call.1']
    #allocation7 [shape = 'u8[16384]{0}', space=vmem, size = 0x4000, scoped, tag = 'input window, operand 2, single buffered']
    #allocation8 [shape = 'u8[16384]{0}', space=vmem, size = 0x4000, scoped, tag = 'output window, operand 0']
    %9 = vsyncpa [#allocation3], 0
    %s10 = scalar_lea.sflag [#allocation3], 1
    %11 = vsyncpa %s10, 0
    %12 = vsyncpa [#allocation6], 0
    %s13 = scalar_lea.sflag [#allocation6], 1
    %14 = vsyncpa %s13, 0
    %15 = vsyncpa [#allocation4], 0
    %s16 = scalar_lea.sflag [#allocation4], 1
    %17 = vsyncpa %s16, 0
    loop: start=0, step=1, limit=6
    $region2: #{tpu_custom_call.1} parent=1 // loop_pre_header
      _
    $region3: #{tpu_custom_call.1} parent=1 // loop_header
      %s19 = sphi 0, %s23
      %p20 = scmp.ge.s32.totalorder %s19, 6
      %s29 = sphi 0, %s31
      %s32 = sphi 0, %s29
      %s33 = sphi 0, %s32
      %s49 = sphi 0, %s33
      %s55 = sphi 0, %s57
      %s58 = sphi 0, %s55
      %s59 = sphi 0, %s58
      %s75 = sphi 0, %s59
      %s79 = sphi 0, %s79
      %s81 = sphi 0, %s79
      %s82 = sphi 0, %s81
      %s96 = sphi 0, %s82
      %s100 = sphi 0, %s100
      %s102 = sphi 0, %s100
      %s103 = sphi 0, %s102
      %s117 = sphi 0, %s103
      %s123 = sphi 0, %s125
      %s126 = sphi 0, %s123
      %s127 = sphi 0, %s126
      %s143 = sphi 0, %s127
    $region4: #{tpu_custom_call.1} parent=1 // loop_header_branch
      %22 = sbr.rel (%p20) target = $region8
    $region5: #{tpu_custom_call.1} parent=1 // loop_body
      %s24 = ssub.s32 %s19, 1
      %s25 = ssub.s32 %s19, 2
      %s26 = sadd.s32 %s19, 1
      %s27 = ssub.s32 %s19, %s26
      %p28 = scmp.eq.s32.totalorder %s27, 0
      %s30 = sadd.s32 %s29, 1
      %s31 = scalar_select %p28, %s29, %s30
      %p34 = pneg %p28
      %p35 = scmp.eq.s32.totalorder %s19, 3
      %p36 = por %p34, %p35
      %p37 = scmp.ne.s32.totalorder %s29, %s32
      %p38 = scmp.eq.s32.totalorder %s19, 0
      %p39 = por %p37, %p38
      %p40 = scmp.ne.s32.totalorder %s29, %s32
      %p41 = scmp.eq.s32.totalorder %s24, 3
      %p42 = por %p40, %p41
      %p43 = scmp.ne.s32.totalorder %s32, %s33
      %p44 = scmp.eq.s32.totalorder %s24, 0
      %p45 = por %p43, %p44
      %p46 = scmp.ne.s32.totalorder %s32, %s33
      %p47 = scmp.eq.s32.totalorder %s25, 3
      %p48 = por %p46, %p47
      %p50 = scmp.ne.s32.totalorder %s33, %s49
      %p51 = scmp.eq.s32.totalorder %s25, 0
      %p52 = por %p50, %p51
      %s53 = ssub.s32 %s19, %s26
      %p54 = scmp.eq.s32.totalorder %s53, 0
      %s56 = sadd.s32 %s55, 1
      %s57 = scalar_select %p54, %s55, %s56
      %p60 = pneg %p54
      %p61 = scmp.eq.s32.totalorder %s19, 3
      %p62 = por %p60, %p61
      %p63 = scmp.ne.s32.totalorder %s55, %s58
      %p64 = scmp.eq.s32.totalorder %s19, 0
      %p65 = por %p63, %p64
      %p66 = scmp.ne.s32.totalorder %s55, %s58
      %p67 = scmp.eq.s32.totalorder %s24, 3
      %p68 = por %p66, %p67
      %p69 = scmp.ne.s32.totalorder %s58, %s59
      %p70 = scmp.eq.s32.totalorder %s24, 0
      %p71 = por %p69, %p70
      %p72 = scmp.ne.s32.totalorder %s58, %s59
      %p73 = scmp.eq.s32.totalorder %s25, 3
      %p74 = por %p72, %p73
      %p76 = scmp.ne.s32.totalorder %s59, %s75
      %p77 = scmp.eq.s32.totalorder %s25, 0
      %p78 = por %p76, %p77
      %s80 = sadd.s32 %s79, 1
      %p83 = scmp.eq.s32.totalorder %s19, 3
      %p84 = scmp.ne.s32.totalorder %s79, %s81
      %p85 = scmp.eq.s32.totalorder %s19, 0
      %p86 = por %p84, %p85
      %p87 = scmp.ne.s32.totalorder %s79, %s81
      %p88 = scmp.eq.s32.totalorder %s24, 3
      %p89 = por %p87, %p88
      %p90 = scmp.ne.s32.totalorder %s81, %s82
      %p91 = scmp.eq.s32.totalorder %s24, 0
      %p92 = por %p90, %p91
      %p93 = scmp.ne.s32.totalorder %s81, %s82
      %p94 = scmp.eq.s32.totalorder %s25, 3
      %p95 = por %p93, %p94
      %p97 = scmp.ne.s32.totalorder %s82, %s96
      %p98 = scmp.eq.s32.totalorder %s25, 0
      %p99 = por %p97, %p98
      %s101 = sadd.s32 %s100, 1
      %p104 = scmp.eq.s32.totalorder %s19, 3
      %p105 = scmp.ne.s32.totalorder %s100, %s102
      %p106 = scmp.eq.s32.totalorder %s19, 0
      %p107 = por %p105, %p106
      %p108 = scmp.ne.s32.totalorder %s100, %s102
      %p109 = scmp.eq.s32.totalorder %s24, 3
      %p110 = por %p108, %p109
      %p111 = scmp.ne.s32.totalorder %s102, %s103
      %p112 = scmp.eq.s32.totalorder %s24, 0
      %p113 = por %p111, %p112
      %p114 = scmp.ne.s32.totalorder %s102, %s103
      %p115 = scmp.eq.s32.totalorder %s25, 3
      %p116 = por %p114, %p115
      %p118 = scmp.ne.s32.totalorder %s103, %s117
      %p119 = scmp.eq.s32.totalorder %s25, 0
      %p120 = por %p118, %p119
      %s121 = ssub.s32 %s19, %s26
      %p122 = scmp.eq.s32.totalorder %s121, 0
      %s124 = sadd.s32 %s123, 1
      %s125 = scalar_select %p122, %s123, %s124
      %p128 = pneg %p122
      %p129 = scmp.eq.s32.totalorder %s19, 3
      %p130 = por %p128, %p129
      %p131 = scmp.ne.s32.totalorder %s123, %s126
      %p132 = scmp.eq.s32.totalorder %s19, 0
      %p133 = por %p131, %p132
      %p134 = scmp.ne.s32.totalorder %s123, %s126
      %p135 = scmp.eq.s32.totalorder %s24, 3
      %p136 = por %p134, %p135
      %p137 = scmp.ne.s32.totalorder %s126, %s127
      %p138 = scmp.eq.s32.totalorder %s24, 0
      %p139 = por %p137, %p138
      %p140 = scmp.ne.s32.totalorder %s126, %s127
      %p141 = scmp.eq.s32.totalorder %s25, 3
      %p142 = por %p140, %p141
      %p144 = scmp.ne.s32.totalorder %s127, %s143
      %p145 = scmp.eq.s32.totalorder %s25, 0
      %p146 = por %p144, %p145
      %p147 = scmp.le.s32.totalorder 1, %s19
      %p148 = scmp.lt.s32.totalorder %s19, 5
      %p149 = pnand %p147, %p148
      %p150 = pneg %p149
      // Predicated region
      $region9: #{tpu_custom_call.1} parent=5 // pred_check
        _
      $region10: #{tpu_custom_call.1} parent=5 // pred_check_branch
        %152 = sbr.rel (%p149) target = $region12
      $region11: #{tpu_custom_call.1} parent=5 // pred_region
        %s153 = ssub.s32 %s19, 1
        // Predicated region
        $region13: #{tpu_custom_call.1} parent=11 // pred_check
          %p154 = pneg %p92
        $region14: #{tpu_custom_call.1} parent=11 // pred_check_branch
          %156 = sbr.rel (%p154) target = $region16
        $region15: #{tpu_custom_call.1} parent=11 // pred_region
          %158 = vsyncadd [#allocation6], 0
          %s159 = sshll.u32 %s2, 4
          %s160 = int_to_ptr.hbm [resolvable:$true] %s159
          %s161 = sshll.u32 [#allocation7], 4
          %s162 = int_to_ptr.vmem [resolvable:$true] %s161
          %167 = dma.hbm_to_vmem [thread:$0]  %s160, 512, %s162, [#allocation6], 128, 128, 8
        $region16: #{tpu_custom_call.1} parent=11 // pred_fallthru
          _
        // Predicated region
        $region17: #{tpu_custom_call.1} parent=11 // pred_check
          %p168 = pneg %p113
        $region18: #{tpu_custom_call.1} parent=11 // pred_check_branch
          %170 = sbr.rel (%p168) target = $region20
        $region19: #{tpu_custom_call.1} parent=11 // pred_region
          _
        $region20: #{tpu_custom_call.1} parent=11 // pred_fallthru
          _
      $region12: #{tpu_custom_call.1} parent=5 // pred_fallthru
        _
      %p171 = scmp.lt.s32.totalorder %s19, 4
      // Predicated region
      $region21: #{tpu_custom_call.1} parent=5 // pred_check
        %p172 = pneg %p171
      $region22: #{tpu_custom_call.1} parent=5 // pred_check_branch
        %174 = sbr.rel (%p172) target = $region24
      $region23: #{tpu_custom_call.1} parent=5 // pred_region
        // Predicated region
        $region25: #{tpu_custom_call.1} parent=23 // pred_check
          %p175 = pneg %p39
        $region26: #{tpu_custom_call.1} parent=23 // pred_check_branch
          %177 = sbr.rel (%p175) target = $region28
        $region27: #{tpu_custom_call.1} parent=23 // pred_region
          %s178 = sand.u32 %s29, 1
          %s179 = scalar_lea.sflag [#allocation3], %s178
          %s180 = sand.u32 %s29, 1
          %s181 = smul.addr %s180, 16
          %s182 = scalar_lea.vmem [#allocation2], %s181
          %184 = vsyncadd %s179, 0
          %s185 = smul.addr %s19, 2
          %s186 = smul.addr %s185, 8
          %s187 = scalar_lea.hbm %s0, %s186
          %s188 = sshll.u32 %s187, 4
          %s189 = int_to_ptr.hbm [resolvable:$true] %s188
          %s190 = sshll.u32 %s182, 4
          %s191 = int_to_ptr.vmem [resolvable:$true] %s190
          %196 = dma.hbm_to_vmem [thread:$0]  %s189, 256, %s191, %s179, 128, 128, 8
        $region28: #{tpu_custom_call.1} parent=23 // pred_fallthru
          _
        // Predicated region
        $region29: #{tpu_custom_call.1} parent=23 // pred_check
          %p197 = pneg %p65
        $region30: #{tpu_custom_call.1} parent=23 // pred_check_branch
          %199 = sbr.rel (%p197) target = $region32
        $region31: #{tpu_custom_call.1} parent=23 // pred_region
          %s200 = sand.u32 %s19, 1
          %s201 = scalar_lea.sflag [#allocation6], %s200
          %s202 = sand.u32 %s55, 1
          %s203 = smul.addr %s202, 16
          %s204 = scalar_lea.vmem [#allocation5], %s203
          %206 = vsyncadd %s201, 0
          %s207 = smul.addr %s19, 2
          %s208 = smul.addr %s207, 8
          %s209 = scalar_lea.hbm %s1, %s208
          %s210 = sshll.u32 %s209, 4
          %s211 = int_to_ptr.hbm [resolvable:$true] %s210
          %s212 = sshll.u32 %s204, 4
          %s213 = int_to_ptr.vmem [resolvable:$true] %s212
          %218 = dma.hbm_to_vmem [thread:$0]  %s211, 256, %s213, %s201, 128, 128, 8
        $region32: #{tpu_custom_call.1} parent=23 // pred_fallthru
          _
      $region24: #{tpu_custom_call.1} parent=5 // pred_fallthru
        _
      %p219 = scmp.le.s32.totalorder 1, %s19
      %p220 = scmp.lt.s32.totalorder %s19, 5
      %p221 = pnand %p219, %p220
      %p222 = pneg %p221
      // Predicated region
      $region33: #{tpu_custom_call.1} parent=5 // pred_check
        _
      $region34: #{tpu_custom_call.1} parent=5 // pred_check_branch
        %224 = sbr.rel (%p221) target = $region36
      $region35: #{tpu_custom_call.1} parent=5 // pred_region
        %s225 = ssub.s32 %s19, 1
        %s226 = sand.u32 %s32, 1
        %s227 = scalar_lea.sflag [#allocation3], %s226
        %s228 = sand.u32 %s32, 1
        %s229 = smul.addr %s228, 16
        %s230 = scalar_lea.vmem [#allocation2], %s229
        // Predicated region
        $region37: #{tpu_custom_call.1} parent=35 // pred_check
          %p231 = pneg %p45
        $region38: #{tpu_custom_call.1} parent=35 // pred_check_branch
          %233 = sbr.rel (%p231) target = $region40
        $region39: #{tpu_custom_call.1} parent=35 // pred_region
          %235 = dma.done %s227, 256
        $region40: #{tpu_custom_call.1} parent=35 // pred_fallthru
          _
        %s236 = sand.u32 %s24, 1
        %s237 = scalar_lea.sflag [#allocation6], %s236
        %s238 = sand.u32 %s58, 1
        %s239 = smul.addr %s238, 16
        %s240 = scalar_lea.vmem [#allocation5], %s239
        // Predicated region
        $region41: #{tpu_custom_call.1} parent=35 // pred_check
          %p241 = pneg %p71
        $region42: #{tpu_custom_call.1} parent=35 // pred_check_branch
          %243 = sbr.rel (%p241) target = $region44
        $region43: #{tpu_custom_call.1} parent=35 // pred_region
          %245 = dma.done %s237, 256
        $region44: #{tpu_custom_call.1} parent=35 // pred_fallthru
          _
        // Predicated region
        $region45: #{tpu_custom_call.1} parent=35 // pred_check
          %p246 = pneg %p92
        $region46: #{tpu_custom_call.1} parent=35 // pred_check_branch
          %248 = sbr.rel (%p246) target = $region48
        $region47: #{tpu_custom_call.1} parent=35 // pred_region
          %250 = dma.done [#allocation6], 512
        $region48: #{tpu_custom_call.1} parent=35 // pred_fallthru
          _
        %s251 = sand.u32 %s32, 1
        %s252 = scalar_lea.sflag [#allocation3], %s251
        %s253 = sand.u32 %s32, 1
        %s254 = smul.addr %s253, 16
        %s255 = scalar_lea.vmem [#allocation2], %s254
        %p256 = pneg %p45
        %p257 = pneg %p42
        %s258 = sand.u32 %s24, 1
        %s259 = scalar_lea.sflag [#allocation6], %s258
        %s260 = sand.u32 %s58, 1
        %s261 = smul.addr %s260, 16
        %s262 = scalar_lea.vmem [#allocation5], %s261
        %p263 = pneg %p71
        %p264 = pneg %p68
        %p265 = pneg %p92
        %p266 = pneg %p89
        %p267 = pneg %p113
        %p268 = pneg %p110
        %p269 = pneg %p139
        %p270 = pneg %p136
        %s271 = sand.u32 %s126, 1
        %s272 = scalar_lea.sflag [#allocation4], %s271
        %s273 = sand.u32 %s126, 1
        %s274 = smul.addr %s273, 16
        %s275 = scalar_lea.vmem [#allocation8], %s274
        %v277 = vld [vmem:[#allocation7] sm:$0xff]
        %v278 = vld [vmem:[#allocation7 + $0x8] sm:$0xff]
        %v279 = vld [vmem:[#allocation7 + $0x10] sm:$0xff]
        %v280 = vld [vmem:[#allocation7 + $0x18] sm:$0xff]
        %v281 = vpack.c.bf16 %v278, %v277
        %v282 = vpack.c.bf16 %v280, %v279
        %v283 = vld [vmem:[%s240] sm:$0xff]
        %v284 = vld [vmem:[%s240 + $0x8] sm:$0xff]
        %v285 = vpack.c.bf16 %v284, %v283
        %v286 = vld [vmem:[%s3] sm:$0x1]
        %v288 = vperm.slane %v286, 0
        %vm290 = vcmask 261120
        %v292 = vsel %vm290, %v285, 0
        %294 = vmatpush.bf16.msra.mxu0 0
        %295 = vmatpush.bf16.msra.mxu0 0
        %296 = vmatpush.bf16.msra.mxu0 0
        %297 = vmatpush.bf16.msra.mxu0 0
        %298 = vmatpush.bf16.msra.mxu0 0
        %299 = vmatpush.bf16.msra.mxu0 0
        %300 = vmatpush.bf16.msra.mxu0 %v282
        %301 = vmatpush.bf16.msra.mxu0 %v281
        %302 = vmatmul.bf16.gmra.mxu0 %v292
        %v303 = vpop.f32.mrf.mxu0
        %v304 = vadd.f32 %v288, %v303
        %v305 = vpop.f32.mrf.mxu0
        %v306 = vadd.f32 %v288, %v305
        %307 = vdwg.mxu0
        %v308 = vld [vmem:[%s230] sm:$0xff]
        %v309 = vld [vmem:[%s230 + $0x8] sm:$0xff]
        %v310 = vand.u32 2147483647, %v308
        %v311 = vand.u32 2147483647, %v309
        %vm312 = vcmask 130048
        %v313 = vsel %vm312, %v310, 0.0
        %v314 = vsel %vm312, %v311, 0.0
        %v315 = vadd.f32 %v313, %v314
        %v316 = vrot.slane %v315, 4
        %v317 = vadd.f32 %v315, %v316
        %v318 = vrot.slane %v317, 2
        %v319 = vadd.f32 %v317, %v318
        %v320 = vrot.slane %v319, 1
        %v321 = vadd.f32 %v319, %v320
        %v322 = vmax.f32 %v321, 1e-12
        %v323 = vrcp.pop %v322
        %v324 = vmul.f32 %v322, %v323
        %v325 = vsub.f32 1.0, %v324
        %v326 = vmul.f32 %v323, %v325
        %v327 = vadd.f32 %v323, %v326
        %vm328 = vweird.f32 %v322
        %vm329 = vweird.f32 %v323
        %vm330 = vmor %vm328, %vm329
        %v331 = vsel %vm330, %v323, %v327
        %v332 = vand.u32 2147483647, %v322
        %vm333 = vcmp.eq.f32.partialorder %v332, 8.507059e+37
        %v334 = vand.u32 %v322, 2147483648
        %v335 = vor.u32 1.1754944e-38, %v334
        %v336 = vsel %vm333, %v335, %v331
        %v337 = vmul.f32 %v308, %v336
        %v338 = vmul.f32 %v309, %v336
        %v339 = vpack.c.bf16 %v337, %v337
        %v340 = vpack.c.bf16 %v338, %v338
        %v341 = vpack.c.bf16 %v304, %v304
        %v342 = vpack.c.bf16 %v306, %v306
        %v345 = vunpack.c.l.b16 %v339
        %v346 = vunpack.c.l.b16 %v340
        %v347 = vpack.c.b16 %v346, %v345
        %v350 = vunpack.c.l.b16 %v341
        %v351 = vunpack.c.l.b16 %v342
        %v352 = vpack.c.b16 %v351, %v350
        %v355 = vsel %vm312, %v347, 0
        %357 = vmatpush.bf16.msra.mxu0 0
        %358 = vmatpush.bf16.msra.mxu0 0
        %359 = vmatpush.bf16.msra.mxu0 0
        %360 = vmatpush.bf16.msra.mxu0 0
        %361 = vmatpush.bf16.msra.mxu0 0
        %362 = vmatpush.bf16.msra.mxu0 0
        %363 = vmatpush.bf16.msra.mxu0 0
        %364 = vmatpush.bf16.msra.mxu0 %v352
        %365 = vmatmul.bf16.gmra.mxu0 %v355
        %v366 = vpop.f32.mrf.mxu0
        %v367 = vadd.f32 0.0, %v366
        %v368 = vpop.f32.mrf.mxu0
        %v369 = vadd.f32 0.0, %v368
        %370 = vdwg.mxu0
        %v371 = vmax.f32 %v367, 0.0
        %v372 = vmax.f32 %v369, 0.0
        %373 = vst.msk [vmem:[%s275] sm:$0xff] %vm290, %v371
        %374 = vst.msk [vmem:[%s275 + $0x8] sm:$0xff] %vm290, %v372
        %s375 = sand.u32 %s126, 1
        %s376 = scalar_lea.sflag [#allocation4], %s375
        %s377 = sand.u32 %s126, 1
        %s378 = smul.addr %s377, 16
        %s379 = scalar_lea.vmem [#allocation8], %s378
        // Predicated region
        $region49: #{tpu_custom_call.1} parent=35 // pred_check
          %p380 = pneg %p136
        $region50: #{tpu_custom_call.1} parent=35 // pred_check_branch
          %382 = sbr.rel (%p380) target = $region52
        $region51: #{tpu_custom_call.1} parent=35 // pred_region
          %384 = vsyncadd %s376, 0
          %s385 = smul.addr %s24, 2
          %s386 = smul.addr %s385, 8
          %s387 = scalar_lea.hbm %s4, %s386
          %s388 = sshll.u32 %s379, 4
          %s389 = int_to_ptr.vmem [resolvable:$true] %s388
          %s390 = sshll.u32 %s387, 4
          %s391 = int_to_ptr.hbm [resolvable:$true] %s390
          %396 = dma.vmem_to_hbm [thread:$0]  %s389, 256, %s391, %s376, 128, 128, 8
        $region52: #{tpu_custom_call.1} parent=35 // pred_fallthru
          _
      $region36: #{tpu_custom_call.1} parent=5 // pred_fallthru
        _
      %p397 = scmp.le.s32.totalorder 2, %s19
      // Predicated region
      $region53: #{tpu_custom_call.1} parent=5 // pred_check
        %p398 = pneg %p397
      $region54: #{tpu_custom_call.1} parent=5 // pred_check_branch
        %400 = sbr.rel (%p398) target = $region56
      $region55: #{tpu_custom_call.1} parent=5 // pred_region
        %s401 = ssub.s32 %s19, 2
        // Predicated region
        $region57: #{tpu_custom_call.1} parent=55 // pred_check
          %p402 = pneg %p142
        $region58: #{tpu_custom_call.1} parent=55 // pred_check_branch
          %404 = sbr.rel (%p402) target = $region60
        $region59: #{tpu_custom_call.1} parent=55 // pred_region
          %s405 = sand.u32 %s127, 1
          %s406 = scalar_lea.sflag [#allocation4], %s405
          %s407 = sand.u32 %s127, 1
          %s408 = smul.addr %s407, 16
          %s409 = scalar_lea.vmem [#allocation8], %s408
          %411 = dma.done %s406, 256
        $region60: #{tpu_custom_call.1} parent=55 // pred_fallthru
          _
      $region56: #{tpu_custom_call.1} parent=5 // pred_fallthru
        _
    $region6: #{tpu_custom_call.1} parent=1 // loop_footer
      %s23 = sadd.s32 1, %s19
    $region7: #{tpu_custom_call.1} parent=1 // loop_footer_branch
      %18 = sbr.rel target = $region3
    $region8: #{tpu_custom_call.1} parent=1 // loop_exit
      _
    %412 = vsyncpa [#allocation3], 1
    %s413 = scalar_lea.sflag [#allocation3], 1
    %414 = vsyncpa %s413, 1
    %415 = vsyncpa [#allocation6], 1
    %s416 = scalar_lea.sflag [#allocation6], 1
    %417 = vsyncpa %s416, 1
    %418 = vsyncpa [#allocation4], 1
    %s419 = scalar_lea.sflag [#allocation4], 1
    %420 = vsyncpa %s419, 1

</llo_original>
